<compile_context>
chip_gen: v7x
topology: tpu7x:2x2x1
jax: 0.10.0
libtpu: 0.0.40
codegen_flags: <defaults>
</compile_context>

<pallas_src>
import functools

import jax
import jax.numpy as jnp
from jax.experimental import pallas as pl
from jax.experimental.pallas import tpu as pltpu


def _pick_tile(dim, preferred, align):
    """Largest multiple of `align` <= preferred that divides `dim`; else full dim."""
    t = min(preferred, dim)
    t = (t // align) * align
    while t >= align:
        if dim % t == 0:
            return t
        t -= align
    return dim  # fall back to the full (untiled) axis


def gcn_glu_kernel(a_ref, x_ref, w_ref, b_ref, o_ref, acc_ref, *, BCOUT):
    # a_ref:   (TILE_N, TILE_K)          adjacency tile
    # x_ref:   (TILE_K, B*C_IN)          node-feature tile (flattened over (B, c_in))
    # w_ref:   (B*C_IN, 2*B*C_OUT)       block-diagonal 1x1-conv weight
    # b_ref:   (1, 2*B*C_OUT)            bias, tiled per batch
    # o_ref:   (TILE_N, B*C_OUT)         output tile (flattened over (B, c_out))
    # acc_ref: (TILE_N, B*C_IN) f32      VMEM accumulator for A @ X
    k = pl.program_id(1)

    @pl.when(k == 0)
    def _():
        acc_ref[...] = jnp.zeros_like(acc_ref)

    # Graph aggregation on the MXU: AX[v, (b,c)] += A[v, n] * X[n, (b,c)]
    acc_ref[...] += jnp.dot(a_ref[...], x_ref[...],
                            preferred_element_type=jnp.float32)

    @pl.when(k == pl.num_programs(1) - 1)
    def _():
        # Fused 1x1 conv over all batches in one lane-dense GEMM + GLU epilogue.
        z = jnp.dot(acc_ref[...], w_ref[...],
                    preferred_element_type=jnp.float32) + b_ref[...]
        z1 = z[:, :BCOUT]          # (TILE_N, B*C_OUT)  -> "axw_1" per batch
        z2 = z[:, BCOUT:]          # (TILE_N, B*C_OUT)  -> "axw_2" per batch
        o_ref[...] = (z1 * jax.nn.sigmoid(z2)).astype(o_ref.dtype)


def gcn_glu_forward(x, A, weight, bias, c_out, *, tile_n=256, tile_k=256):
    """x: (N, B, c_in) f32, A: (N, N) f32,
    weight: (2*c_out, c_in, 1, 1) f32 (PyTorch Conv2d layout), bias: (2*c_out,).
    Returns (N, B, c_out) f32."""
    N, B, c_in = x.shape
    x_flat = x.reshape(N, B * c_in)

    # Block-diagonal weight: out columns ordered [z1(b=0..B-1) | z2(b=0..B-1)],
    # each block (c_in, c_out) so the GLU split and output store are lane-dense.
    W = weight.reshape(2 * c_out, c_in)                  # (2*c_out, c_in)
    w1t = W[:c_out, :].T                                 # (c_in, c_out)
    w2t = W[c_out:, :].T                                 # (c_in, c_out)
    eye_b = jnp.eye(B, dtype=W.dtype)
    w_bd = jnp.concatenate(
        [jnp.kron(eye_b, w1t), jnp.kron(eye_b, w2t)], axis=1)      # (B*c_in, 2*B*c_out)
    b_bd = jnp.concatenate(
        [jnp.tile(bias[:c_out], B), jnp.tile(bias[c_out:], B)]
    ).reshape(1, 2 * B * c_out)

    # Tile sizes: row tile aligned to 8 sublanes, contraction tile aligned to
    # 128 lanes (or fall back to the full axis).  Sized to fit comfortably in
    # scoped VMEM with double buffering (<= ~1 MiB for the A tiles at 256x256).
    tn = _pick_tile(N, tile_n, 8)
    tk = _pick_tile(N, tile_k, 128)
    grid = (N // tn, N // tk)

    kernel = functools.partial(gcn_glu_kernel, BCOUT=B * c_out)

    out_flat = pl.pallas_call(
        kernel,
        out_shape=jax.ShapeDtypeStruct((N, B * c_out), jnp.float32),
        grid_spec=pltpu.PrefetchScalarGridSpec(
            num_scalar_prefetch=0,
            grid=grid,
            in_specs=[
                pl.BlockSpec((tn, tk), lambda i, k: (i, k)),                   # A
                pl.BlockSpec((tk, B * c_in), lambda i, k: (k, 0)),             # X
                pl.BlockSpec((B * c_in, 2 * B * c_out), lambda i, k: (0, 0)),  # W_bd
                pl.BlockSpec((1, 2 * B * c_out), lambda i, k: (0, 0)),         # bias
            ],
            out_specs=pl.BlockSpec((tn, B * c_out), lambda i, k: (i, 0)),
            scratch_shapes=[pltpu.VMEM((tn, B * c_in), jnp.float32)],
        ),
        compiler_params=pltpu.CompilerParams(
            dimension_semantics=("parallel", "arbitrary")),
    )(A, x_flat, w_bd, b_bd)

    return out_flat.reshape(N, B, c_out)


def gcn_glu_reference(x, A, weight, bias, c_out):
    """Pure-JAX reference mirroring the PyTorch module step by step."""
    hp = jax.lax.Precision.HIGHEST
    xb = jnp.transpose(x[:, :, :, None], (1, 2, 0, 3))            # (B, c_in, N, 1)
    ax = jnp.einsum('vn,bfnt->bfvt', A, xb, precision=hp)
    w = weight.reshape(weight.shape[0], weight.shape[1])          # (2*c_out, c_in)
    axw = jnp.einsum('oc,bcvt->bovt', w, ax, precision=hp) + bias[None, :, None, None]
    a1 = axw[:, :c_out]
    a2 = axw[:, c_out:]
    out = a1 * jax.nn.sigmoid(a2)                                 # (B, c_out, N, 1)
    return jnp.transpose(out[:, :, :, 0], (2, 0, 1))              # (N, B, c_out)


def _run_case(key, N, B, c_in, c_out, atol, rtol):
    kx, ka, kw, kb = jax.random.split(key, 4)
    x = jax.random.normal(kx, (N, B, c_in), dtype=jnp.float32)
    A = jax.random.normal(ka, (N, N), dtype=jnp.float32)
    weight = jax.random.normal(kw, (2 * c_out, c_in, 1, 1), dtype=jnp.float32) * 0.1
    bias = jax.random.normal(kb, (2 * c_out,), dtype=jnp.float32) * 0.1

    out = jax.block_until_ready(gcn_glu_forward(x, A, weight, bias, c_out))
    ref = gcn_glu_reference(x, A, weight, bias, c_out)
    assert out.shape == (N, B, c_out)
    assert jnp.allclose(out, ref, atol=atol, rtol=rtol), \
        f"mismatch vs reference (N={N})"


if __name__ == "__main__":
    key = jax.random.PRNGKey(0)
    k1, k2 = jax.random.split(key)

    # Small deterministic example matching the module: N=16 nodes, B=2, c_in=4, c_out=8.
    _run_case(k1, N=16, B=2, c_in=4, c_out=8, atol=1e-5, rtol=1e-5)

    # Larger case exercising the 2-D grid (row tiling + K-tiled accumulator).
    _run_case(k2, N=512, B=2, c_in=4, c_out=8, atol=1e-4, rtol=1e-4)

    print("KERNEL_OK")
</pallas_src>

<mosaic_0001>
module attributes {stable_mosaic.version = 11 : i64} {
  func.func @gcn_glu_kernel(%arg0: i32, %arg1: i32, %arg2: memref<16x16xf32, #tpu.memory_space<vmem>>, %arg3: memref<16x8xf32, #tpu.memory_space<vmem>>, %arg4: memref<8x32xf32, #tpu.memory_space<vmem>>, %arg5: memref<1x32xf32, #tpu.memory_space<vmem>>, %arg6: memref<16x16xf32, #tpu.memory_space<vmem>>, %arg7: memref<16x8xf32, #tpu.memory_space<vmem>>) attributes {dimension_semantics = [#tpu.dimension_semantics<parallel>, #tpu.dimension_semantics<arbitrary>], iteration_bounds = array<i64: 1, 1>, scalar_prefetch = 0 : i64, scratch_operands = 1 : i64, tpu.core_type = #tpu.core_type<tc>, window_params = [{transform_indices = @transform_0, window_bounds = array<i64: 16, 16>}, {transform_indices = @transform_1, window_bounds = array<i64: 16, 8>}, {pipeline_mode = #tpu.pipeline_mode<synchronous>, transform_indices = @transform_2, window_bounds = array<i64: 8, 32>}, {pipeline_mode = #tpu.pipeline_mode<synchronous>, transform_indices = @transform_3, window_bounds = array<i64: 1, 32>}, {transform_indices = @transform_4, window_bounds = array<i64: 16, 16>}]} {
    %c0_i32 = arith.constant 0 : i32
    %0 = arith.cmpi eq, %arg1, %c0_i32 : i32
    %1 = arith.extui %0 : i1 to i32
    %c0_i32_0 = arith.constant 0 : i32
    %2 = arith.cmpi ne, %1, %c0_i32_0 : i32
    scf.if %2 {
      %cst_10 = arith.constant 0.000000e+00 : f32
      %12 = vector.broadcast %cst_10 : f32 to vector<16x8xf32>
      %c0_11 = arith.constant 0 : index
      %c0_12 = arith.constant 0 : index
      %13 = vector.load %arg7[%c0_11, %c0_12] : memref<16x8xf32, #tpu.memory_space<vmem>>, vector<16x8xf32>
      tpu.vector_store %arg7[%c0_11, %c0_12], %12 {strides = array<i32>} : memref<16x8xf32, #tpu.memory_space<vmem>>, vector<16x8xf32>,
    } else {
    }
    %c0 = arith.constant 0 : index
    %c0_1 = arith.constant 0 : index
    %3 = vector.load %arg7[%c0, %c0_1] : memref<16x8xf32, #tpu.memory_space<vmem>>, vector<16x8xf32>
    %c0_2 = arith.constant 0 : index
    %c0_3 = arith.constant 0 : index
    %4 = vector.load %arg2[%c0_2, %c0_3] : memref<16x16xf32, #tpu.memory_space<vmem>>, vector<16x16xf32>
    %c0_4 = arith.constant 0 : index
    %c0_5 = arith.constant 0 : index
    %5 = vector.load %arg3[%c0_4, %c0_5] : memref<16x8xf32, #tpu.memory_space<vmem>>, vector<16x8xf32>
    %cst = arith.constant dense<0.000000e+00> : vector<16x8xf32>
    %6 = tpu.matmul %4, %5, %cst {dimension_numbers = #tpu.dot_dimension_numbers<[1], [0], [0], [1], [0, 0, 1, 1], [], []>} : vector<16x16xf32>, vector<16x8xf32>, vector<16x8xf32> -> vector<16x8xf32>
    %7 = arith.addf %3, %6 : vector<16x8xf32>
    %c0_6 = arith.constant 0 : index
    %c0_7 = arith.constant 0 : index
    %8 = vector.load %arg7[%c0_6, %c0_7] : memref<16x8xf32, #tpu.memory_space<vmem>>, vector<16x8xf32>
    tpu.vector_store %arg7[%c0_6, %c0_7], %7 {strides = array<i32>} : memref<16x8xf32, #tpu.memory_space<vmem>>, vector<16x8xf32>,
    %c0_i32_8 = arith.constant 0 : i32
    %9 = arith.cmpi eq, %arg1, %c0_i32_8 : i32
    %10 = arith.extui %9 : i1 to i32
    %c0_i32_9 = arith.constant 0 : i32
    %11 = arith.cmpi ne, %10, %c0_i32_9 : i32
    scf.if %11 {
      %c0_10 = arith.constant 0 : index
      %c0_11 = arith.constant 0 : index
      %12 = vector.load %arg7[%c0_10, %c0_11] : memref<16x8xf32, #tpu.memory_space<vmem>>, vector<16x8xf32>
      %c0_12 = arith.constant 0 : index
      %c0_13 = arith.constant 0 : index
      %13 = vector.load %arg4[%c0_12, %c0_13] : memref<8x32xf32, #tpu.memory_space<vmem>>, vector<8x32xf32>
      %cst_14 = arith.constant dense<0.000000e+00> : vector<16x32xf32>
      %14 = tpu.matmul %12, %13, %cst_14 {dimension_numbers = #tpu.dot_dimension_numbers<[1], [0], [0], [1], [0, 0, 1, 1], [], []>} : vector<16x8xf32>, vector<8x32xf32>, vector<16x32xf32> -> vector<16x32xf32>
      %c0_15 = arith.constant 0 : index
      %c0_16 = arith.constant 0 : index
      %15 = vector.load %arg5[%c0_15, %c0_16] : memref<1x32xf32, #tpu.memory_space<vmem>>, vector<1x32xf32>
      %16 = vector.broadcast %15 : vector<1x32xf32> to vector<16x32xf32>
      %17 = arith.addf %14, %16 : vector<16x32xf32>
      %18 = vector.extract_strided_slice %17 {offsets = [0, 0], sizes = [16, 16], strides = [1, 1]} : vector<16x32xf32> to vector<16x16xf32>
      %19 = vector.extract_strided_slice %17 {offsets = [0, 16], sizes = [16, 16], strides = [1, 1]} : vector<16x32xf32> to vector<16x16xf32>
      %20 = arith.negf %19 : vector<16x16xf32>
      %21 = math.exp %20 : vector<16x16xf32>
      %cst_17 = arith.constant 1.000000e+00 : f32
      %22 = vector.broadcast %cst_17 : f32 to vector<16x16xf32>
      %23 = arith.addf %22, %21 : vector<16x16xf32>
      %24 = arith.divf %22, %23 : vector<16x16xf32>
      %25 = arith.mulf %18, %24 : vector<16x16xf32>
      %c0_18 = arith.constant 0 : index
      %c0_19 = arith.constant 0 : index
      %26 = vector.load %arg6[%c0_18, %c0_19] : memref<16x16xf32, #tpu.memory_space<vmem>>, vector<16x16xf32>
      tpu.vector_store %arg6[%c0_18, %c0_19], %25 {strides = array<i32>} : memref<16x16xf32, #tpu.memory_space<vmem>>, vector<16x16xf32>,
    } else {
    }
    return
  }
  func.func @transform_0(%arg0: i32, %arg1: i32) -> (i32, i32) {
    %c0_i32 = arith.constant 0 : i32
    return %arg0, %arg1 : i32, i32
  }
  func.func @transform_1(%arg0: i32, %arg1: i32) -> (i32, i32) {
    %c0_i32 = arith.constant 0 : i32
    %c0_i32_0 = arith.constant 0 : i32
    return %arg1, %c0_i32 : i32, i32
  }
  func.func @transform_2(%arg0: i32, %arg1: i32) -> (i32, i32) {
    %c0_i32 = arith.constant 0 : i32
    %c0_i32_0 = arith.constant 0 : i32
    %c0_i32_1 = arith.constant 0 : i32
    return %c0_i32, %c0_i32_0 : i32, i32
  }
  func.func @transform_3(%arg0: i32, %arg1: i32) -> (i32, i32) {
    %c0_i32 = arith.constant 0 : i32
    %c0_i32_0 = arith.constant 0 : i32
    %c0_i32_1 = arith.constant 0 : i32
    return %c0_i32, %c0_i32_0 : i32, i32
  }
  func.func @transform_4(%arg0: i32, %arg1: i32) -> (i32, i32) {
    %c0_i32 = arith.constant 0 : i32
    %c0_i32_0 = arith.constant 0 : i32
    return %arg0, %c0_i32 : i32, i32
  }
}

</mosaic_0001>

<llo_original>
// kernel: tpu_custom_call.1
$region0: #{tpu_custom_call.1}
  #allocation0 [shape = 'u32[]', space=smem, size = 0x4, offset = 0x4, fixed_abs, tag = 'smem constant byte address 0x4 - core index']
  #allocation1 [shape = 'u32[144,128]{1,0:T(1,128)}', space=vmem, size = 0x12000, scoped, tag = 'internal scratch']
  #allocation2 [shape = 'f32[16,8]{1,0:T(8,128)}', space=vmem, size = 0x2000, scoped, tag = 'scratch operand']
  %s0 = inlined_call_operand.vmem [shape: f32[16,16], index: 0, kind: input, shape index: {}]
  %s1 = inlined_call_operand.vmem [shape: f32[16,8], index: 1, kind: input, shape index: {}]
  %s2 = inlined_call_operand.vmem [shape: f32[8,32], index: 2, kind: input, shape index: {}]
  %s3 = inlined_call_operand.vmem [shape: f32[1,32], index: 3, kind: input, shape index: {}]
  %s4 = inlined_call_operand.hbm [shape: f32[16,16], index: 4, kind: output, shape index: {}]
  %s5 = sld [smem:[#allocation0]]
  $region34: #{tpu_custom_call.1} parent=0
    _
  %s7 = ssub.s32 1, %s5
  %s8 = scalar_select 0, %s7, %s5
  $region1: #{tpu_custom_call.1} parent=0
    #allocation3 [shape = 'u8[8192]{0}', space=vmem, size = 0x2000, scoped, tag = 'output window, operand 0, single buffered']
    #allocation4 [shape = 's32[1]{0}', space=sflag, size = 0x4, scoped, tag = 'scoped memory for tpu_custom_call.1']
    %9 = vsyncpa [#allocation4], 0
    // Predicated region
    $region2: #{tpu_custom_call.1} parent=1 // pred_check
      _
    $region3: #{tpu_custom_call.1} parent=1 // pred_check_branch
      %11 = sbr.rel (0) target = $region5
    $region4: #{tpu_custom_call.1} parent=1 // pred_region
      _
    $region5: #{tpu_custom_call.1} parent=1 // pred_fallthru
      _
    // Predicated region
    $region6: #{tpu_custom_call.1} parent=1 // pred_check
      _
    $region7: #{tpu_custom_call.1} parent=1 // pred_check_branch
      %13 = sbr.rel (0) target = $region9
    $region8: #{tpu_custom_call.1} parent=1 // pred_region
      _
    $region9: #{tpu_custom_call.1} parent=1 // pred_fallthru
      _
    // Predicated region
    $region10: #{tpu_custom_call.1} parent=1 // pred_check
      _
    $region11: #{tpu_custom_call.1} parent=1 // pred_check_branch
      %15 = sbr.rel (0) target = $region13
    $region12: #{tpu_custom_call.1} parent=1 // pred_region
      _
    $region13: #{tpu_custom_call.1} parent=1 // pred_fallthru
      _
    // Predicated region
    $region14: #{tpu_custom_call.1} parent=1 // pred_check
      _
    $region15: #{tpu_custom_call.1} parent=1 // pred_check_branch
      %17 = sbr.rel (0) target = $region17
    $region16: #{tpu_custom_call.1} parent=1 // pred_region
      _
    $region17: #{tpu_custom_call.1} parent=1 // pred_fallthru
      _
    %p18 = scmp.eq.s32.totalorder 0, 0
    // Predicated region
    $region18: #{tpu_custom_call.1} parent=1 // pred_check
      %p19 = pneg %p18
    $region19: #{tpu_custom_call.1} parent=1 // pred_check_branch
      %21 = sbr.rel (%p19) target = $region21
    $region20: #{tpu_custom_call.1} parent=1 // pred_region
      %vm22 = vcmask 64512
      %23 = vst.msk [vmem:[#allocation2] sm:$0xff] %vm22, 0.0
      %24 = vst.msk [vmem:[#allocation2 + $0x8] sm:$0xff] %vm22, 0.0
    $region21: #{tpu_custom_call.1} parent=1 // pred_fallthru
      _
    %v25 = vld [vmem:[#allocation2] sm:$0xff]
    %v26 = vld [vmem:[#allocation2 + $0x8] sm:$0xff]
    %v27 = vld [vmem:[%s0] sm:$0xff]
    %v28 = vld [vmem:[%s0 + $0x8] sm:$0xff]
    %v29 = vld [vmem:[%s1] sm:$0xff]
    %v30 = vld [vmem:[%s1 + $0x8] sm:$0xff]
    %vm31 = vcmask 130048
    %v33 = vsel %vm31, %v27, 0
    %v36 = vsel %vm31, %v28, 0
    %38 = vmatprep.subr.mxu0 0.0
    %39 = vmatpush1.msra.mxu0 %v29
    %40 = vmatprep.subr.mxu0 0.0
    %41 = vmatpush1.msra.mxu0 %v30
    %42 = vmatprep.subr.mxu0 0.0
    %43 = vmatpush1.msra.mxu0 0.0
    %44 = vmatprep.subr.mxu0 0.0
    %45 = vmatpush1.msra.mxu0 0.0
    %46 = vmatprep.subr.mxu0 0.0
    %47 = vmatpush1.msra.mxu0 0.0
    %48 = vmatprep.subr.mxu0 0.0
    %49 = vmatpush1.msra.mxu0 0.0
    %50 = vmatprep.subr.mxu0 0.0
    %51 = vmatpush1.msra.mxu0 0.0
    %52 = vmatprep.subr.mxu0 0.0
    %53 = vmatpush1.msra.mxu0 0.0
    %54 = vmatprep.subr.mxu0 0.0
    %55 = vmatpush1.msra.mxu0 0.0
    %56 = vmatprep.subr.mxu0 0.0
    %57 = vmatpush1.msra.mxu0 0.0
    %58 = vmatprep.subr.mxu0 0.0
    %59 = vmatpush1.msra.mxu0 0.0
    %60 = vmatprep.subr.mxu0 0.0
    %61 = vmatpush1.msra.mxu0 0.0
    %62 = vmatprep.subr.mxu0 0.0
    %63 = vmatpush1.msra.mxu0 0.0
    %64 = vmatprep.subr.mxu0 0.0
    %65 = vmatpush1.msra.mxu0 0.0
    %66 = vmatprep.subr.mxu0 0.0
    %67 = vmatpush1.msra.mxu0 0.0
    %68 = vmatprep.subr.mxu0 0.0
    %69 = vmatpush1.msra.mxu0 0.0
    %70 = vmatprep.subr.mxu0 0.0
    %71 = vmatpush1.msra.mxu0 0.0
    %72 = vmatprep.subr.mxu0 0.0
    %73 = vmatpush1.msra.mxu0 0.0
    %74 = vmatprep.subr.mxu0 0.0
    %75 = vmatpush1.msra.mxu0 0.0
    %76 = vmatprep.subr.mxu0 0.0
    %77 = vmatpush1.msra.mxu0 0.0
    %78 = vmatprep.subr.mxu0 0.0
    %79 = vmatpush1.msra.mxu0 0.0
    %80 = vmatprep.subr.mxu0 0.0
    %81 = vmatpush1.msra.mxu0 0.0
    %82 = vmatprep.subr.mxu0 0.0
    %83 = vmatpush1.msra.mxu0 0.0
    %84 = vmatprep.subr.mxu0 0.0
    %85 = vmatpush1.msra.mxu0 0.0
    %86 = vmatprep.subr.mxu0 0.0
    %87 = vmatpush1.msra.mxu0 0.0
    %88 = vmatprep.subr.mxu0 0.0
    %89 = vmatpush1.msra.mxu0 0.0
    %90 = vmatprep.subr.mxu0 0.0
    %91 = vmatpush1.msra.mxu0 0.0
    %92 = vmatprep.subr.mxu0 0.0
    %93 = vmatpush1.msra.mxu0 0.0
    %94 = vmatprep.subr.mxu0 0.0
    %95 = vmatpush1.msra.mxu0 0.0
    %96 = vmatprep.subr.mxu0 0.0
    %97 = vmatpush1.msra.mxu0 0.0
    %98 = vmatprep.subr.mxu0 0.0
    %99 = vmatpush1.msra.mxu0 0.0
    %100 = vmatprep.subr.mxu0 0.0
    %101 = vmatpush1.msra.mxu0 0.0
    %102 = vmatprep.mubr.f32.mxu0 0.0
    %103 = vmatmul.mubr.f32.gmra.mrb[0].mxu0 %v33
    %v104 = vpop.f32.mrb[0].mxu0
    %v105 = vadd.f32 0.0, %v104
    %v106 = vpop.f32.mrb[0].mxu0
    %107 = vmatprep.mubr.f32.mxu0 0.0
    %108 = vmatmul.mubr.f32.gmra.mrb[0].mxu0 %v36
    %v109 = vpop.f32.mrb[0].mxu0
    %v110 = vadd.f32 0.0, %v109
    %v111 = vpop.f32.mrb[0].mxu0
    %112 = vdwg.mxu0
    %v113 = vadd.f32 %v25, %v105
    %v114 = vadd.f32 %v26, %v110
    %vm115 = vcmask 64512
    %116 = vst.msk [vmem:[#allocation2] sm:$0xff] %vm115, %v113
    %117 = vst.msk [vmem:[#allocation2 + $0x8] sm:$0xff] %vm115, %v114
    // Predicated region
    $region22: #{tpu_custom_call.1} parent=1 // pred_check
      %p118 = pneg %p18
    $region23: #{tpu_custom_call.1} parent=1 // pred_check_branch
      %120 = sbr.rel (%p118) target = $region25
    $region24: #{tpu_custom_call.1} parent=1 // pred_region
      %v121 = vld [vmem:[#allocation2] sm:$0xff]
      %v122 = vld [vmem:[#allocation2 + $0x8] sm:$0xff]
      %v123 = vld [vmem:[%s2] sm:$0xff]
      %v124 = vld [vmem:[%s3] sm:$0x1]
      %v126 = vlaneseq
      %v127 = vshrl.u32 %v126, 7
      %v128 = vsub.s32 0, %v127
      %v129 = vrot.slane %v124, %v128
      %v132 = vsel %vm115, %v121, 0
      %v135 = vsel %vm115, %v122, 0
      %137 = vmatprep.subr.mxu0 0.0
      %138 = vmatpush1.msra.mxu0 %v123
      %139 = vmatprep.subr.mxu0 0.0
      %140 = vmatpush1.msra.mxu0 0.0
      %141 = vmatprep.subr.mxu0 0.0
      %142 = vmatpush1.msra.mxu0 0.0
      %143 = vmatprep.subr.mxu0 0.0
      %144 = vmatpush1.msra.mxu0 0.0
      %145 = vmatprep.subr.mxu0 0.0
      %146 = vmatpush1.msra.mxu0 0.0
      %147 = vmatprep.subr.mxu0 0.0
      %148 = vmatpush1.msra.mxu0 0.0
      %149 = vmatprep.subr.mxu0 0.0
      %150 = vmatpush1.msra.mxu0 0.0
      %151 = vmatprep.subr.mxu0 0.0
      %152 = vmatpush1.msra.mxu0 0.0
      %153 = vmatprep.subr.mxu0 0.0
      %154 = vmatpush1.msra.mxu0 0.0
      %155 = vmatprep.subr.mxu0 0.0
      %156 = vmatpush1.msra.mxu0 0.0
      %157 = vmatprep.subr.mxu0 0.0
      %158 = vmatpush1.msra.mxu0 0.0
      %159 = vmatprep.subr.mxu0 0.0
      %160 = vmatpush1.msra.mxu0 0.0
      %161 = vmatprep.subr.mxu0 0.0
      %162 = vmatpush1.msra.mxu0 0.0
      %163 = vmatprep.subr.mxu0 0.0
      %164 = vmatpush1.msra.mxu0 0.0
      %165 = vmatprep.subr.mxu0 0.0
      %166 = vmatpush1.msra.mxu0 0.0
      %167 = vmatprep.subr.mxu0 0.0
      %168 = vmatpush1.msra.mxu0 0.0
      %169 = vmatprep.subr.mxu0 0.0
      %170 = vmatpush1.msra.mxu0 0.0
      %171 = vmatprep.subr.mxu0 0.0
      %172 = vmatpush1.msra.mxu0 0.0
      %173 = vmatprep.subr.mxu0 0.0
      %174 = vmatpush1.msra.mxu0 0.0
      %175 = vmatprep.subr.mxu0 0.0
      %176 = vmatpush1.msra.mxu0 0.0
      %177 = vmatprep.subr.mxu0 0.0
      %178 = vmatpush1.msra.mxu0 0.0
      %179 = vmatprep.subr.mxu0 0.0
      %180 = vmatpush1.msra.mxu0 0.0
      %181 = vmatprep.subr.mxu0 0.0
      %182 = vmatpush1.msra.mxu0 0.0
      %183 = vmatprep.subr.mxu0 0.0
      %184 = vmatpush1.msra.mxu0 0.0
      %185 = vmatprep.subr.mxu0 0.0
      %186 = vmatpush1.msra.mxu0 0.0
      %187 = vmatprep.subr.mxu0 0.0
      %188 = vmatpush1.msra.mxu0 0.0
      %189 = vmatprep.subr.mxu0 0.0
      %190 = vmatpush1.msra.mxu0 0.0
      %191 = vmatprep.subr.mxu0 0.0
      %192 = vmatpush1.msra.mxu0 0.0
      %193 = vmatprep.subr.mxu0 0.0
      %194 = vmatpush1.msra.mxu0 0.0
      %195 = vmatprep.subr.mxu0 0.0
      %196 = vmatpush1.msra.mxu0 0.0
      %197 = vmatprep.subr.mxu0 0.0
      %198 = vmatpush1.msra.mxu0 0.0
      %199 = vmatprep.subr.mxu0 0.0
      %200 = vmatpush1.msra.mxu0 0.0
      %201 = vmatprep.mubr.f32.mxu0 0.0
      %202 = vmatmul.mubr.f32.gmra.mrb[0].mxu0 %v132
      %v203 = vpop.f32.mrb[0].mxu0
      %v204 = vadd.f32 %v129, %v203
      %v205 = vpop.f32.mrb[0].mxu0
      %206 = vmatprep.mubr.f32.mxu0 0.0
      %207 = vmatmul.mubr.f32.gmra.mrb[0].mxu0 %v135
      %v208 = vpop.f32.mrb[0].mxu0
      %v209 = vadd.f32 %v129, %v208
      %v210 = vpop.f32.mrb[0].mxu0
      %211 = vdwg.mxu0
      %v212 = vxor.u32 %v204, 2147483648
      %v213 = vxor.u32 %v209, 2147483648
      %v214 = vmul.f32 %v212, 1.442695
      %v215 = vpow.pop %v214
      %v216 = vmul.f32 %v213, 1.442695
      %v217 = vpow.pop %v216
      %v218 = vadd.f32 %v215, 1.0
      %v219 = vadd.f32 %v217, 1.0
      %v220 = vrcp.pop %v218
      %v221 = vmul.f32 1.0, %v220
      %v222 = vrcp.pop %v219
      %v223 = vmul.f32 1.0, %v222
      %226 = vrot.lane.b32.xlu0 %v221, 112
      %v227 = vpop.permute.xlu0 %226
      %228 = vrot.lane.b32.xlu0 %v223, 112
      %v229 = vpop.permute.xlu0 %228
      %v232 = vmul.f32 %v204, %v227
      %v233 = vmul.f32 %v209, %v229
      %234 = vst.msk [vmem:[#allocation3] sm:$0xff] %vm31, %v232
      %235 = vst.msk [vmem:[#allocation3 + $0x8] sm:$0xff] %vm31, %v233
    $region25: #{tpu_custom_call.1} parent=1 // pred_fallthru
      _
    // Predicated region
    $region26: #{tpu_custom_call.1} parent=1 // pred_check
      _
    $region27: #{tpu_custom_call.1} parent=1 // pred_check_branch
      %237 = sbr.rel (0) target = $region29
    $region28: #{tpu_custom_call.1} parent=1 // pred_region
      %s239 = ssub.s32 256, 256
      %240 = vsyncadd [#allocation4], %s239
      %s241 = sshll.u32 [#allocation3], 4
      %s242 = int_to_ptr.vmem [resolvable:$true] %s241
      %247 = dma.vmem_to_hbm [thread:$0]  %s242, 256, %s4, [#allocation4], 128, 128, 8
    $region29: #{tpu_custom_call.1} parent=1 // pred_fallthru
      _
    // Predicated region
    $region30: #{tpu_custom_call.1} parent=1 // pred_check
      _
    $region31: #{tpu_custom_call.1} parent=1 // pred_check_branch
      %249 = sbr.rel (0) target = $region33
    $region32: #{tpu_custom_call.1} parent=1 // pred_region
      %250 = dma.done [#allocation4], 256
    $region33: #{tpu_custom_call.1} parent=1 // pred_fallthru
      _
    %251 = vsyncpa [#allocation4], 1

</llo_original>
